<compile_context>
chip_gen: v7x
topology: tpu7x:2x2x1
jax: 0.10.0
libtpu: 0.0.40
codegen_flags: <defaults>
</compile_context>

<pallas_src>
import functools

import numpy as np

import jax
import jax.numpy as jnp
from jax.experimental import pallas as pl
from jax.experimental.pallas import tpu as pltpu


def generate_lbcnn_filters(size, sparcity=0.9, seed=71):
    """JAX port of the LBCNN random binary filter generator.

    size = (out_channels, in_channels_per_group, k, k). Values are in
    {-1, 0, +1}: bernoulli(0.5)*2-1, then zeroed with prob (1 - sparcity).
    (Deterministic given `seed`; not bit-identical to torch's RNG stream.)
    """
    key = jax.random.PRNGKey(seed)
    k_bern, k_mask = jax.random.split(key)
    filters = jax.random.bernoulli(k_bern, 0.5, size).astype(jnp.float32) * 2.0 - 1.0
    drop = jax.random.uniform(k_mask, size) > sparcity
    filters = jnp.where(drop, 0.0, filters)
    return filters


@functools.lru_cache(maxsize=None)
def _roll_convention(width=384, shift=131):
    """Probe pltpu.roll's lane-rotation convention once (tiny one-off kernel).

    Returns:
      "numpy"   if pltpu.roll(x, s, -1)[i] == x[(i - s) % L]   (jnp.roll-like)
      "reverse" if pltpu.roll(x, s, -1)[i] == x[(i + s) % L]
      None      if pltpu.roll is unusable here -> caller falls back to jnp.roll.
    """
    def probe_kernel(x_ref, o_ref):
        o_ref[...] = pltpu.roll(x_ref[...], shift=shift, axis=-1)

    x_np = np.arange(8 * width, dtype=np.float32).reshape(8, width)
    try:
        y = pl.pallas_call(
            probe_kernel,
            out_shape=jax.ShapeDtypeStruct((8, width), jnp.float32),
        )(jnp.asarray(x_np))
        y = np.asarray(jax.block_until_ready(y))
    except Exception:
        return None
    if np.array_equal(y, np.roll(x_np, shift, axis=-1)):
        return "numpy"
    if np.array_equal(y, np.roll(x_np, -shift, axis=-1)):
        return "reverse"
    return None


def _make_lbp_conv_kernel(offsets, L):
    """Per-batch-element kernel, specialized on the surviving tap offsets.

    offsets : tuple of python ints; flat (padded-image) offset of each tap.
    L       : flattened lane length (multiple of 128).
    """
    convention = _roll_convention()
    num_taps = len(offsets)

    def shifted(x, off):
        # want: result[k] == x[k + off]  (left-rotation by `off` lanes)
        if off == 0:
            return x
        if convention == "numpy":
            return pltpu.roll(x, shift=(L - off) % L, axis=-1)
        if convention == "reverse":
            return pltpu.roll(x, shift=off, axis=-1)
        return jnp.roll(x, -off, axis=-1)   # safe fallback (slices + concat)

    def kernel(x_ref, w_ref, o_ref):
        # x_ref: (1, C_out, L)  flattened padded image, one row per out-channel
        # w_ref: (C_out, T)     per-channel coefficient of each surviving tap
        # o_ref: (1, C_out, L)  lane-dense output slab (cropped in the wrapper)
        x = x_ref[0]
        w = w_ref[...]
        acc = w[:, 0:1] * shifted(x, offsets[0])         # init from first tap
        for t in range(1, num_taps):
            acc = acc + w[:, t:t + 1] * shifted(x, offsets[t])
        o_ref[0] = acc.astype(o_ref.dtype)

    return kernel


def random_binary_convolution(x, weight, padding=0):
    """Forward pass of RandomBinaryConvolution (stride=1, groups=C_in, no bias).

    x      : (N, C_in, H, W) float32
    weight : (C_out, 1, K, K) float32 (frozen), C_out % C_in == 0
    """
    N, C_in, H, W = x.shape
    C_out, _, K, _ = weight.shape
    assert C_out % C_in == 0
    mult = C_out // C_in

    Hp, Wp = H + 2 * padding, W + 2 * padding
    H_out, W_out = Hp - K + 1, Wp - K + 1

    # ---- trace-time specialization on the frozen filter bank --------------
    w_np = np.asarray(jax.device_get(weight))[:, 0, :, :]        # (C_out, K, K)
    offsets, cols = [], []
    for p in range(K):
        for q in range(K):
            col = w_np[:, p, q]
            if np.any(col != 0.0):             # drop all-zero (sparse) taps
                offsets.append(p * Wp + q)     # flat offset in padded image
                cols.append(col)
    if not offsets:
        return jnp.zeros((N, C_out, H_out, W_out), x.dtype)
    coef = jnp.asarray(np.stack(cols, axis=1), dtype=x.dtype)    # (C_out, T)
    T = len(offsets)

    # ---- lane-dense layout plumbing (wrapper side, tiny arrays) ------------
    if padding > 0:
        # TODO(synk): for repeated large-shape calls, fold the zero-pad into the
        # kernel (masked edge taps) instead of materializing a padded HBM copy.
        x = jnp.pad(x, ((0, 0), (0, 0), (padding, padding), (padding, padding)))
    L_img = Hp * Wp
    L = ((L_img + 127) // 128) * 128           # lane axis: multiple of 128
    x_flat = x.reshape(N, C_in, L_img)
    if L != L_img:
        x_flat = jnp.pad(x_flat, ((0, 0), (0, 0), (0, L - L_img)))
    # group -> output-channel expansion: row o reads input channel o // mult
    x_exp = jnp.repeat(x_flat, mult, axis=1)                     # (N, C_out, L)

    kernel = _make_lbp_conv_kernel(tuple(offsets), L)

    out_flat = pl.pallas_call(
        kernel,
        out_shape=jax.ShapeDtypeStruct((N, C_out, L), x.dtype),
        grid_spec=pltpu.PrefetchScalarGridSpec(
            num_scalar_prefetch=0,
            grid=(N,),
            in_specs=[
                pl.BlockSpec((1, C_out, L), lambda n: (n, 0, 0)),
                pl.BlockSpec((C_out, T), lambda n: (0, 0)),
            ],
            out_specs=pl.BlockSpec((1, C_out, L), lambda n: (n, 0, 0)),
        ),
        compiler_params=pltpu.CompilerParams(
            dimension_semantics=("parallel",)),
    )(x_exp, coef)

    # valid outputs live at flat index i*Wp + j with i < H_out, j < W_out
    out = out_flat[:, :, :L_img].reshape(N, C_out, Hp, Wp)[:, :, :H_out, :W_out]
    return out


def _reference_conv(x, weight, padding):
    """Plain-JAX reference (lax grouped conv) for a correctness check."""
    C_in = x.shape[1]
    return jax.lax.conv_general_dilated(
        x, weight,
        window_strides=(1, 1),
        padding=[(padding, padding), (padding, padding)],
        dimension_numbers=("NCHW", "OIHW", "NCHW"),
        feature_group_count=C_in,
    )


if __name__ == "__main__":
    in_channels, out_channels, kernel_size = 4, 8, 3

    weight = generate_lbcnn_filters(
        (out_channels, 1, kernel_size, kernel_size), sparcity=0.9, seed=71)
    # LBPLoss additionally pins filter 0 to a scaled center tap:
    weight = weight.at[0].set(0.0)
    weight = weight.at[0, :, kernel_size // 2, kernel_size // 2].set(
        0.5 * kernel_size ** 2)

    key = jax.random.PRNGKey(0)
    x = jax.random.normal(key, (2, in_channels, 16, 16), dtype=jnp.float32)

    # padding=0 is what LBPLoss uses (no jnp.pad path); padding=1 exercises the
    # padded path. Both are checked against the lax grouped-conv reference.
    for padding in (0, 1):
        y = jax.block_until_ready(random_binary_convolution(x, weight, padding))
        y_ref = _reference_conv(x, weight, padding)
        assert y.shape == y_ref.shape
        assert jnp.allclose(y, y_ref, atol=1e-5, rtol=1e-5)

    print("KERNEL_OK")
</pallas_src>

<mosaic_0001>
module attributes {stable_mosaic.version = 11 : i64} {
  func.func @kernel(%arg0: i32, %arg1: memref<1x8x256xf32, #tpu.memory_space<vmem>>, %arg2: memref<8x9xf32, #tpu.memory_space<vmem>>, %arg3: memref<1x8x256xf32, #tpu.memory_space<vmem>>) attributes {dimension_semantics = [#tpu.dimension_semantics<parallel>], iteration_bounds = array<i64: 2>, scalar_prefetch = 0 : i64, scratch_operands = 0 : i64, tpu.core_type = #tpu.core_type<tc>, window_params = [{transform_indices = @transform_0, window_bounds = array<i64: 1, 8, 256>}, {pipeline_mode = #tpu.pipeline_mode<synchronous>, transform_indices = @transform_1, window_bounds = array<i64: 8, 9>}, {transform_indices = @transform_2, window_bounds = array<i64: 1, 8, 256>}]} {
    %c0 = arith.constant 0 : index
    %c0_0 = arith.constant 0 : index
    %c0_1 = arith.constant 0 : index
    %0 = vector.load %arg1[%c0, %c0_0, %c0_1] : memref<1x8x256xf32, #tpu.memory_space<vmem>>, vector<1x8x256xf32>
    %1 = vector.shape_cast %0 : vector<1x8x256xf32> to vector<8x256xf32>
    %c0_2 = arith.constant 0 : index
    %c0_3 = arith.constant 0 : index
    %2 = vector.load %arg2[%c0_2, %c0_3] : memref<8x9xf32, #tpu.memory_space<vmem>>, vector<8x9xf32>
    %3 = vector.extract_strided_slice %2 {offsets = [0, 0], sizes = [8, 1], strides = [1, 1]} : vector<8x9xf32> to vector<8x1xf32>
    %4 = vector.broadcast %3 : vector<8x1xf32> to vector<8x256xf32>
    %5 = arith.mulf %4, %1 : vector<8x256xf32>
    %6 = vector.extract_strided_slice %2 {offsets = [0, 1], sizes = [8, 1], strides = [1, 1]} : vector<8x9xf32> to vector<8x1xf32>
    %7 = vector.extract_strided_slice %1 {offsets = [0, 1], sizes = [8, 255], strides = [1, 1]} : vector<8x256xf32> to vector<8x255xf32>
    %8 = vector.extract_strided_slice %1 {offsets = [0, 0], sizes = [8, 1], strides = [1, 1]} : vector<8x256xf32> to vector<8x1xf32>
    %9 = tpu.concatenate %7, %8 in 1 : vector<8x255xf32>, vector<8x1xf32> -> vector<8x256xf32>
    %10 = vector.broadcast %6 : vector<8x1xf32> to vector<8x256xf32>
    %11 = arith.mulf %10, %9 : vector<8x256xf32>
    %12 = arith.addf %5, %11 : vector<8x256xf32>
    %13 = vector.extract_strided_slice %2 {offsets = [0, 2], sizes = [8, 1], strides = [1, 1]} : vector<8x9xf32> to vector<8x1xf32>
    %14 = vector.extract_strided_slice %1 {offsets = [0, 2], sizes = [8, 254], strides = [1, 1]} : vector<8x256xf32> to vector<8x254xf32>
    %15 = vector.extract_strided_slice %1 {offsets = [0, 0], sizes = [8, 2], strides = [1, 1]} : vector<8x256xf32> to vector<8x2xf32>
    %16 = tpu.concatenate %14, %15 in 1 : vector<8x254xf32>, vector<8x2xf32> -> vector<8x256xf32>
    %17 = vector.broadcast %13 : vector<8x1xf32> to vector<8x256xf32>
    %18 = arith.mulf %17, %16 : vector<8x256xf32>
    %19 = arith.addf %12, %18 : vector<8x256xf32>
    %20 = vector.extract_strided_slice %2 {offsets = [0, 3], sizes = [8, 1], strides = [1, 1]} : vector<8x9xf32> to vector<8x1xf32>
    %21 = vector.extract_strided_slice %1 {offsets = [0, 16], sizes = [8, 240], strides = [1, 1]} : vector<8x256xf32> to vector<8x240xf32>
    %22 = vector.extract_strided_slice %1 {offsets = [0, 0], sizes = [8, 16], strides = [1, 1]} : vector<8x256xf32> to vector<8x16xf32>
    %23 = tpu.concatenate %21, %22 in 1 : vector<8x240xf32>, vector<8x16xf32> -> vector<8x256xf32>
    %24 = vector.broadcast %20 : vector<8x1xf32> to vector<8x256xf32>
    %25 = arith.mulf %24, %23 : vector<8x256xf32>
    %26 = arith.addf %19, %25 : vector<8x256xf32>
    %27 = vector.extract_strided_slice %2 {offsets = [0, 4], sizes = [8, 1], strides = [1, 1]} : vector<8x9xf32> to vector<8x1xf32>
    %28 = vector.extract_strided_slice %1 {offsets = [0, 17], sizes = [8, 239], strides = [1, 1]} : vector<8x256xf32> to vector<8x239xf32>
    %29 = vector.extract_strided_slice %1 {offsets = [0, 0], sizes = [8, 17], strides = [1, 1]} : vector<8x256xf32> to vector<8x17xf32>
    %30 = tpu.concatenate %28, %29 in 1 : vector<8x239xf32>, vector<8x17xf32> -> vector<8x256xf32>
    %31 = vector.broadcast %27 : vector<8x1xf32> to vector<8x256xf32>
    %32 = arith.mulf %31, %30 : vector<8x256xf32>
    %33 = arith.addf %26, %32 : vector<8x256xf32>
    %34 = vector.extract_strided_slice %2 {offsets = [0, 5], sizes = [8, 1], strides = [1, 1]} : vector<8x9xf32> to vector<8x1xf32>
    %35 = vector.extract_strided_slice %1 {offsets = [0, 18], sizes = [8, 238], strides = [1, 1]} : vector<8x256xf32> to vector<8x238xf32>
    %36 = vector.extract_strided_slice %1 {offsets = [0, 0], sizes = [8, 18], strides = [1, 1]} : vector<8x256xf32> to vector<8x18xf32>
    %37 = tpu.concatenate %35, %36 in 1 : vector<8x238xf32>, vector<8x18xf32> -> vector<8x256xf32>
    %38 = vector.broadcast %34 : vector<8x1xf32> to vector<8x256xf32>
    %39 = arith.mulf %38, %37 : vector<8x256xf32>
    %40 = arith.addf %33, %39 : vector<8x256xf32>
    %41 = vector.extract_strided_slice %2 {offsets = [0, 6], sizes = [8, 1], strides = [1, 1]} : vector<8x9xf32> to vector<8x1xf32>
    %42 = vector.extract_strided_slice %1 {offsets = [0, 32], sizes = [8, 224], strides = [1, 1]} : vector<8x256xf32> to vector<8x224xf32>
    %43 = vector.extract_strided_slice %1 {offsets = [0, 0], sizes = [8, 32], strides = [1, 1]} : vector<8x256xf32> to vector<8x32xf32>
    %44 = tpu.concatenate %42, %43 in 1 : vector<8x224xf32>, vector<8x32xf32> -> vector<8x256xf32>
    %45 = vector.broadcast %41 : vector<8x1xf32> to vector<8x256xf32>
    %46 = arith.mulf %45, %44 : vector<8x256xf32>
    %47 = arith.addf %40, %46 : vector<8x256xf32>
    %48 = vector.extract_strided_slice %2 {offsets = [0, 7], sizes = [8, 1], strides = [1, 1]} : vector<8x9xf32> to vector<8x1xf32>
    %49 = vector.extract_strided_slice %1 {offsets = [0, 33], sizes = [8, 223], strides = [1, 1]} : vector<8x256xf32> to vector<8x223xf32>
    %50 = vector.extract_strided_slice %1 {offsets = [0, 0], sizes = [8, 33], strides = [1, 1]} : vector<8x256xf32> to vector<8x33xf32>
    %51 = tpu.concatenate %49, %50 in 1 : vector<8x223xf32>, vector<8x33xf32> -> vector<8x256xf32>
    %52 = vector.broadcast %48 : vector<8x1xf32> to vector<8x256xf32>
    %53 = arith.mulf %52, %51 : vector<8x256xf32>
    %54 = arith.addf %47, %53 : vector<8x256xf32>
    %55 = vector.extract_strided_slice %2 {offsets = [0, 8], sizes = [8, 1], strides = [1, 1]} : vector<8x9xf32> to vector<8x1xf32>
    %56 = vector.extract_strided_slice %1 {offsets = [0, 34], sizes = [8, 222], strides = [1, 1]} : vector<8x256xf32> to vector<8x222xf32>
    %57 = vector.extract_strided_slice %1 {offsets = [0, 0], sizes = [8, 34], strides = [1, 1]} : vector<8x256xf32> to vector<8x34xf32>
    %58 = tpu.concatenate %56, %57 in 1 : vector<8x222xf32>, vector<8x34xf32> -> vector<8x256xf32>
    %59 = vector.broadcast %55 : vector<8x1xf32> to vector<8x256xf32>
    %60 = arith.mulf %59, %58 : vector<8x256xf32>
    %61 = arith.addf %54, %60 : vector<8x256xf32>
    %c0_4 = arith.constant 0 : index
    %c0_5 = arith.constant 0 : index
    %c0_6 = arith.constant 0 : index
    %62 = vector.load %arg3[%c0_4, %c0_5, %c0_6] : memref<1x8x256xf32, #tpu.memory_space<vmem>>, vector<1x8x256xf32>
    %63 = vector.shape_cast %62 : vector<1x8x256xf32> to vector<8x256xf32>
    %64 = vector.shape_cast %61 : vector<8x256xf32> to vector<1x8x256xf32>
    tpu.vector_store %arg3[%c0_4, %c0_5, %c0_6], %64 {strides = array<i32>} : memref<1x8x256xf32, #tpu.memory_space<vmem>>, vector<1x8x256xf32>,
    return
  }
  func.func @transform_0(%arg0: i32) -> (i32, i32, i32) {
    %c0_i32 = arith.constant 0 : i32
    %c0_i32_0 = arith.constant 0 : i32
    %c0_i32_1 = arith.constant 0 : i32
    return %arg0, %c0_i32, %c0_i32_0 : i32, i32, i32
  }
  func.func @transform_1(%arg0: i32) -> (i32, i32) {
    %c0_i32 = arith.constant 0 : i32
    %c0_i32_0 = arith.constant 0 : i32
    %c0_i32_1 = arith.constant 0 : i32
    return %c0_i32, %c0_i32_0 : i32, i32
  }
  func.func @transform_2(%arg0: i32) -> (i32, i32, i32) {
    %c0_i32 = arith.constant 0 : i32
    %c0_i32_0 = arith.constant 0 : i32
    %c0_i32_1 = arith.constant 0 : i32
    return %arg0, %c0_i32, %c0_i32_0 : i32, i32, i32
  }
}

</mosaic_0001>

<llo_original>
// kernel: tpu_custom_call.1
$region0: #{tpu_custom_call.1}
  #allocation0 [shape = 'u32[]', space=smem, size = 0x4, offset = 0x4, fixed_abs, tag = 'smem constant byte address 0x4 - core index']
  #allocation1 [shape = 'u32[144,128]{1,0:T(1,128)}', space=vmem, size = 0x12000, scoped, tag = 'internal scratch']
  %s0 = inlined_call_operand.hbm [shape: f32[2,8,256], index: 0, kind: input, shape index: {}]
  %s1 = inlined_call_operand.hbm [shape: f32[8,9], index: 1, kind: input, shape index: {}]
  %s2 = inlined_call_operand.hbm [shape: f32[2,8,256], index: 2, kind: output, shape index: {}]
  %s3 = sld [smem:[#allocation0]]
  $region49: #{tpu_custom_call.1} parent=0
    _
  %s5 = ssub.s32 1, %s3
  %s6 = scalar_select 0, %s5, %s3
  $region1: #{tpu_custom_call.1} parent=0
    #allocation2 [shape = 'u8[16384]{0}', space=vmem, size = 0x4000, scoped, tag = 'input window, operand 0']
    #allocation3 [shape = 's32[2]{0}', space=sflag, size = 0x8, scoped, tag = 'scoped memory for tpu_custom_call.1']
    #allocation4 [shape = 's32[2]{0}', space=sflag, size = 0x8, scoped, tag = 'scoped memory for tpu_custom_call.1']
    #allocation5 [shape = 'u8[4096]{0}', space=vmem, size = 0x1000, scoped, tag = 'input window, operand 1, single buffered']
    #allocation6 [shape = 's32[1]{0}', space=sflag, size = 0x4, scoped, tag = 'scoped memory for tpu_custom_call.1']
    #allocation7 [shape = 'u8[16384]{0}', space=vmem, size = 0x4000, scoped, tag = 'output window, operand 0']
    %7 = vsyncpa [#allocation3], 0
    %s8 = scalar_lea.sflag [#allocation3], 1
    %9 = vsyncpa %s8, 0
    %10 = vsyncpa [#allocation6], 0
    %11 = vsyncpa [#allocation4], 0
    %s12 = scalar_lea.sflag [#allocation4], 1
    %13 = vsyncpa %s12, 0
    loop: start=0, step=1, limit=4
    $region2: #{tpu_custom_call.1} parent=1 // loop_pre_header
      _
    $region3: #{tpu_custom_call.1} parent=1 // loop_header
      %s15 = sphi 0, %s19
      %p16 = scmp.ge.s32.totalorder %s15, 4
      %s25 = sphi 0, %s27
      %s28 = sphi 0, %s25
      %s29 = sphi 0, %s28
      %s45 = sphi 0, %s29
      %s49 = sphi 0, %s49
      %s51 = sphi 0, %s49
      %s52 = sphi 0, %s51
      %s66 = sphi 0, %s52
      %s72 = sphi 0, %s74
      %s75 = sphi 0, %s72
      %s76 = sphi 0, %s75
      %s92 = sphi 0, %s76
    $region4: #{tpu_custom_call.1} parent=1 // loop_header_branch
      %18 = sbr.rel (%p16) target = $region8
    $region5: #{tpu_custom_call.1} parent=1 // loop_body
      %s20 = ssub.s32 %s15, 1
      %s21 = ssub.s32 %s15, 2
      %s22 = sadd.s32 %s15, 1
      %s23 = ssub.s32 %s15, %s22
      %p24 = scmp.eq.s32.totalorder %s23, 0
      %s26 = sadd.s32 %s25, 1
      %s27 = scalar_select %p24, %s25, %s26
      %p30 = pneg %p24
      %p31 = scmp.eq.s32.totalorder %s15, 1
      %p32 = por %p30, %p31
      %p33 = scmp.ne.s32.totalorder %s25, %s28
      %p34 = scmp.eq.s32.totalorder %s15, 0
      %p35 = por %p33, %p34
      %p36 = scmp.ne.s32.totalorder %s25, %s28
      %p37 = scmp.eq.s32.totalorder %s20, 1
      %p38 = por %p36, %p37
      %p39 = scmp.ne.s32.totalorder %s28, %s29
      %p40 = scmp.eq.s32.totalorder %s20, 0
      %p41 = por %p39, %p40
      %p42 = scmp.ne.s32.totalorder %s28, %s29
      %p43 = scmp.eq.s32.totalorder %s21, 1
      %p44 = por %p42, %p43
      %p46 = scmp.ne.s32.totalorder %s29, %s45
      %p47 = scmp.eq.s32.totalorder %s21, 0
      %p48 = por %p46, %p47
      %s50 = sadd.s32 %s49, 1
      %p53 = scmp.eq.s32.totalorder %s15, 1
      %p54 = scmp.ne.s32.totalorder %s49, %s51
      %p55 = scmp.eq.s32.totalorder %s15, 0
      %p56 = por %p54, %p55
      %p57 = scmp.ne.s32.totalorder %s49, %s51
      %p58 = scmp.eq.s32.totalorder %s20, 1
      %p59 = por %p57, %p58
      %p60 = scmp.ne.s32.totalorder %s51, %s52
      %p61 = scmp.eq.s32.totalorder %s20, 0
      %p62 = por %p60, %p61
      %p63 = scmp.ne.s32.totalorder %s51, %s52
      %p64 = scmp.eq.s32.totalorder %s21, 1
      %p65 = por %p63, %p64
      %p67 = scmp.ne.s32.totalorder %s52, %s66
      %p68 = scmp.eq.s32.totalorder %s21, 0
      %p69 = por %p67, %p68
      %s70 = ssub.s32 %s15, %s22
      %p71 = scmp.eq.s32.totalorder %s70, 0
      %s73 = sadd.s32 %s72, 1
      %s74 = scalar_select %p71, %s72, %s73
      %p77 = pneg %p71
      %p78 = scmp.eq.s32.totalorder %s15, 1
      %p79 = por %p77, %p78
      %p80 = scmp.ne.s32.totalorder %s72, %s75
      %p81 = scmp.eq.s32.totalorder %s15, 0
      %p82 = por %p80, %p81
      %p83 = scmp.ne.s32.totalorder %s72, %s75
      %p84 = scmp.eq.s32.totalorder %s20, 1
      %p85 = por %p83, %p84
      %p86 = scmp.ne.s32.totalorder %s75, %s76
      %p87 = scmp.eq.s32.totalorder %s20, 0
      %p88 = por %p86, %p87
      %p89 = scmp.ne.s32.totalorder %s75, %s76
      %p90 = scmp.eq.s32.totalorder %s21, 1
      %p91 = por %p89, %p90
      %p93 = scmp.ne.s32.totalorder %s76, %s92
      %p94 = scmp.eq.s32.totalorder %s21, 0
      %p95 = por %p93, %p94
      %p96 = scmp.le.s32.totalorder 1, %s15
      %p97 = scmp.lt.s32.totalorder %s15, 3
      %p98 = pnand %p96, %p97
      %p99 = pneg %p98
      // Predicated region
      $region9: #{tpu_custom_call.1} parent=5 // pred_check
        _
      $region10: #{tpu_custom_call.1} parent=5 // pred_check_branch
        %101 = sbr.rel (%p98) target = $region12
      $region11: #{tpu_custom_call.1} parent=5 // pred_region
        %s102 = ssub.s32 %s15, 1
        // Predicated region
        $region13: #{tpu_custom_call.1} parent=11 // pred_check
          %p103 = pneg %p62
        $region14: #{tpu_custom_call.1} parent=11 // pred_check_branch
          %105 = sbr.rel (%p103) target = $region16
        $region15: #{tpu_custom_call.1} parent=11 // pred_region
          %s107 = ssub.s32 128, 128
          %108 = vsyncadd [#allocation6], %s107
          %s110 = sshll.u32 [#allocation5], 4
          %s111 = int_to_ptr.vmem [resolvable:$true] %s110
          %113 = dma.hbm_to_vmem [thread:$0]  %s1, 128, %s111, [#allocation6]
        $region16: #{tpu_custom_call.1} parent=11 // pred_fallthru
          _
      $region12: #{tpu_custom_call.1} parent=5 // pred_fallthru
        _
      %p114 = scmp.lt.s32.totalorder %s15, 2
      // Predicated region
      $region17: #{tpu_custom_call.1} parent=5 // pred_check
        %p115 = pneg %p114
      $region18: #{tpu_custom_call.1} parent=5 // pred_check_branch
        %117 = sbr.rel (%p115) target = $region20
      $region19: #{tpu_custom_call.1} parent=5 // pred_region
        // Predicated region
        $region21: #{tpu_custom_call.1} parent=19 // pred_check
          %p118 = pneg %p35
        $region22: #{tpu_custom_call.1} parent=19 // pred_check_branch
          %120 = sbr.rel (%p118) target = $region24
        $region23: #{tpu_custom_call.1} parent=19 // pred_region
          %s121 = sand.u32 %s25, 1
          %s122 = scalar_lea.sflag [#allocation3], %s121
          %s123 = sand.u32 %s25, 1
          %s124 = smul.addr %s123, 16
          %s125 = scalar_lea.vmem [#allocation2], %s124
          %s127 = ssub.s32 256, 256
          %128 = vsyncadd %s122, %s127
          %s129 = smul.addr %s15, 2
          %s130 = smul.addr %s129, 128
          %s131 = scalar_lea.hbm %s0, %s130
          %s133 = sshll.u32 %s125, 4
          %s134 = int_to_ptr.vmem [resolvable:$true] %s133
          %136 = dma.hbm_to_vmem [thread:$0]  %s131, 256, %s134, %s122
        $region24: #{tpu_custom_call.1} parent=19 // pred_fallthru
          _
      $region20: #{tpu_custom_call.1} parent=5 // pred_fallthru
        _
      %p137 = scmp.le.s32.totalorder 1, %s15
      %p138 = scmp.lt.s32.totalorder %s15, 3
      %p139 = pnand %p137, %p138
      %p140 = pneg %p139
      // Predicated region
      $region25: #{tpu_custom_call.1} parent=5 // pred_check
        _
      $region26: #{tpu_custom_call.1} parent=5 // pred_check_branch
        %142 = sbr.rel (%p139) target = $region28
      $region27: #{tpu_custom_call.1} parent=5 // pred_region
        %s143 = ssub.s32 %s15, 1
        %s144 = sand.u32 %s28, 1
        %s145 = scalar_lea.sflag [#allocation3], %s144
        %s146 = sand.u32 %s28, 1
        %s147 = smul.addr %s146, 16
        %s148 = scalar_lea.vmem [#allocation2], %s147
        // Predicated region
        $region29: #{tpu_custom_call.1} parent=27 // pred_check
          %p149 = pneg %p41
        $region30: #{tpu_custom_call.1} parent=27 // pred_check_branch
          %151 = sbr.rel (%p149) target = $region32
        $region31: #{tpu_custom_call.1} parent=27 // pred_region
          %152 = dma.done %s145, 256
        $region32: #{tpu_custom_call.1} parent=27 // pred_fallthru
          _
        // Predicated region
        $region33: #{tpu_custom_call.1} parent=27 // pred_check
          %p153 = pneg %p62
        $region34: #{tpu_custom_call.1} parent=27 // pred_check_branch
          %155 = sbr.rel (%p153) target = $region36
        $region35: #{tpu_custom_call.1} parent=27 // pred_region
          %156 = dma.done [#allocation6], 128
        $region36: #{tpu_custom_call.1} parent=27 // pred_fallthru
          _
        %s157 = sand.u32 %s28, 1
        %s158 = scalar_lea.sflag [#allocation3], %s157
        %s159 = sand.u32 %s28, 1
        %s160 = smul.addr %s159, 16
        %s161 = scalar_lea.vmem [#allocation2], %s160
        %p162 = pneg %p41
        %p163 = pneg %p38
        %p164 = pneg %p62
        %p165 = pneg %p59
        %p166 = pneg %p88
        %p167 = pneg %p85
        %s168 = sand.u32 %s75, 1
        %s169 = scalar_lea.sflag [#allocation4], %s168
        %s170 = sand.u32 %s75, 1
        %s171 = smul.addr %s170, 16
        %s172 = scalar_lea.vmem [#allocation7], %s171
        %v173 = vld [vmem:[%s148] sm:$0xff]
        %v174 = vld [vmem:[%s148 + $0x8] sm:$0xff]
        %v175 = vld [vmem:[#allocation5] sm:$0xff]
        %177 = vset.pattern.permute.xlu0 0
        %178 = vperm.xlu0 %177, %v175
        %v179 = vpop.permute.xlu0 %178
        %v181 = vmul.f32 %v179, %v173
        %v182 = vmul.f32 %v179, %v174
        %185 = vrot.lane.b32.xlu0 %v173, 127
        %v186 = vpop.permute.xlu0 %185
        %187 = vrot.lane.b32.xlu0 %v174, 127
        %v188 = vpop.permute.xlu0 %187
        %vm189 = vcmask 1039360
        %v190 = vsel %vm189, %v186, %v188
        %v194 = vsel %vm189, %v188, %v186
        %195 = vset.pattern.permute.xlu0 1
        %196 = vperm.xlu0 %195, %v175
        %v197 = vpop.permute.xlu0 %196
        %v199 = vmul.f32 %v197, %v190
        %v200 = vmul.f32 %v197, %v194
        %v201 = vadd.f32 %v181, %v199
        %v202 = vadd.f32 %v182, %v200
        %203 = vrot.lane.b32.xlu0 %v173, 126
        %v204 = vpop.permute.xlu0 %203
        %205 = vrot.lane.b32.xlu0 %v174, 126
        %v206 = vpop.permute.xlu0 %205
        %vm207 = vcmask 1031168
        %v208 = vsel %vm207, %v204, %v206
        %v212 = vsel %vm207, %v206, %v204
        %213 = vset.pattern.permute.xlu0 2
        %214 = vperm.xlu0 %213, %v175
        %v215 = vpop.permute.xlu0 %214
        %v217 = vmul.f32 %v215, %v208
        %v218 = vmul.f32 %v215, %v212
        %v219 = vadd.f32 %v201, %v217
        %v220 = vadd.f32 %v202, %v218
        %221 = vrot.lane.b32.xlu0 %v173, 112
        %v222 = vpop.permute.xlu0 %221
        %223 = vrot.lane.b32.xlu0 %v174, 112
        %v224 = vpop.permute.xlu0 %223
        %vm225 = vcmask 916480
        %v226 = vsel %vm225, %v222, %v224
        %v230 = vsel %vm225, %v224, %v222
        %231 = vset.pattern.permute.xlu0 3
        %232 = vperm.xlu0 %231, %v175
        %v233 = vpop.permute.xlu0 %232
        %v235 = vmul.f32 %v233, %v226
        %v236 = vmul.f32 %v233, %v230
        %v237 = vadd.f32 %v219, %v235
        %v238 = vadd.f32 %v220, %v236
        %239 = vrot.lane.b32.xlu0 %v173, 111
        %v240 = vpop.permute.xlu0 %239
        %241 = vrot.lane.b32.xlu0 %v174, 111
        %v242 = vpop.permute.xlu0 %241
        %vm243 = vcmask 908288
        %v244 = vsel %vm243, %v240, %v242
        %v248 = vsel %vm243, %v242, %v240
        %249 = vset.pattern.permute.xlu0 4
        %250 = vperm.xlu0 %249, %v175
        %v251 = vpop.permute.xlu0 %250
        %v253 = vmul.f32 %v251, %v244
        %v254 = vmul.f32 %v251, %v248
        %v255 = vadd.f32 %v237, %v253
        %v256 = vadd.f32 %v238, %v254
        %257 = vrot.lane.b32.xlu0 %v173, 110
        %v258 = vpop.permute.xlu0 %257
        %259 = vrot.lane.b32.xlu0 %v174, 110
        %v260 = vpop.permute.xlu0 %259
        %vm261 = vcmask 900096
        %v262 = vsel %vm261, %v258, %v260
        %v266 = vsel %vm261, %v260, %v258
        %267 = vset.pattern.permute.xlu0 5
        %268 = vperm.xlu0 %267, %v175
        %v269 = vpop.permute.xlu0 %268
        %v271 = vmul.f32 %v269, %v262
        %v272 = vmul.f32 %v269, %v266
        %v273 = vadd.f32 %v255, %v271
        %v274 = vadd.f32 %v256, %v272
        %275 = vrot.lane.b32.xlu0 %v173, 96
        %v276 = vpop.permute.xlu0 %275
        %277 = vrot.lane.b32.xlu0 %v174, 96
        %v278 = vpop.permute.xlu0 %277
        %vm279 = vcmask 785408
        %v280 = vsel %vm279, %v276, %v278
        %v284 = vsel %vm279, %v278, %v276
        %285 = vset.pattern.permute.xlu0 6
        %286 = vperm.xlu0 %285, %v175
        %v287 = vpop.permute.xlu0 %286
        %v289 = vmul.f32 %v287, %v280
        %v290 = vmul.f32 %v287, %v284
        %v291 = vadd.f32 %v273, %v289
        %v292 = vadd.f32 %v274, %v290
        %293 = vrot.lane.b32.xlu0 %v173, 95
        %v294 = vpop.permute.xlu0 %293
        %295 = vrot.lane.b32.xlu0 %v174, 95
        %v296 = vpop.permute.xlu0 %295
        %vm297 = vcmask 777216
        %v298 = vsel %vm297, %v294, %v296
        %v302 = vsel %vm297, %v296, %v294
        %303 = vset.pattern.permute.xlu0 7
        %304 = vperm.xlu0 %303, %v175
        %v305 = vpop.permute.xlu0 %304
        %v307 = vmul.f32 %v305, %v298
        %v308 = vmul.f32 %v305, %v302
        %v309 = vadd.f32 %v291, %v307
        %v310 = vadd.f32 %v292, %v308
        %311 = vrot.lane.b32.xlu0 %v173, 94
        %v312 = vpop.permute.xlu0 %311
        %313 = vrot.lane.b32.xlu0 %v174, 94
        %v314 = vpop.permute.xlu0 %313
        %vm315 = vcmask 769024
        %v316 = vsel %vm315, %v312, %v314
        %v320 = vsel %vm315, %v314, %v312
        %321 = vset.pattern.permute.xlu0 8
        %322 = vperm.xlu0 %321, %v175
        %v323 = vpop.permute.xlu0 %322
        %v325 = vmul.f32 %v323, %v316
        %v326 = vmul.f32 %v323, %v320
        %v327 = vadd.f32 %v309, %v325
        %v328 = vadd.f32 %v310, %v326
        %329 = vst [vmem:[%s172] sm:$0xff] %v327
        %330 = vst [vmem:[%s172 + $0x8] sm:$0xff] %v328
        %s331 = sand.u32 %s75, 1
        %s332 = scalar_lea.sflag [#allocation4], %s331
        %s333 = sand.u32 %s75, 1
        %s334 = smul.addr %s333, 16
        %s335 = scalar_lea.vmem [#allocation7], %s334
        // Predicated region
        $region37: #{tpu_custom_call.1} parent=27 // pred_check
          %p336 = pneg %p85
        $region38: #{tpu_custom_call.1} parent=27 // pred_check_branch
          %338 = sbr.rel (%p336) target = $region40
        $region39: #{tpu_custom_call.1} parent=27 // pred_region
          %s340 = ssub.s32 256, 256
          %341 = vsyncadd %s332, %s340
          %s342 = smul.addr %s20, 2
          %s343 = smul.addr %s342, 128
          %s344 = scalar_lea.hbm %s2, %s343
          %s346 = sshll.u32 %s335, 4
          %s347 = int_to_ptr.vmem [resolvable:$true] %s346
          %349 = dma.vmem_to_hbm [thread:$0]  %s347, 256, %s344, %s332
        $region40: #{tpu_custom_call.1} parent=27 // pred_fallthru
          _
      $region28: #{tpu_custom_call.1} parent=5 // pred_fallthru
        _
      %p350 = scmp.le.s32.totalorder 2, %s15
      // Predicated region
      $region41: #{tpu_custom_call.1} parent=5 // pred_check
        %p351 = pneg %p350
      $region42: #{tpu_custom_call.1} parent=5 // pred_check_branch
        %353 = sbr.rel (%p351) target = $region44
      $region43: #{tpu_custom_call.1} parent=5 // pred_region
        %s354 = ssub.s32 %s15, 2
        // Predicated region
        $region45: #{tpu_custom_call.1} parent=43 // pred_check
          %p355 = pneg %p91
        $region46: #{tpu_custom_call.1} parent=43 // pred_check_branch
          %357 = sbr.rel (%p355) target = $region48
        $region47: #{tpu_custom_call.1} parent=43 // pred_region
          %s358 = sand.u32 %s76, 1
          %s359 = scalar_lea.sflag [#allocation4], %s358
          %s360 = sand.u32 %s76, 1
          %s361 = smul.addr %s360, 16
          %s362 = scalar_lea.vmem [#allocation7], %s361
          %363 = dma.done %s359, 256
        $region48: #{tpu_custom_call.1} parent=43 // pred_fallthru
          _
      $region44: #{tpu_custom_call.1} parent=5 // pred_fallthru
        _
    $region6: #{tpu_custom_call.1} parent=1 // loop_footer
      %s19 = sadd.s32 1, %s15
    $region7: #{tpu_custom_call.1} parent=1 // loop_footer_branch
      %14 = sbr.rel target = $region3
    $region8: #{tpu_custom_call.1} parent=1 // loop_exit
      _
    %364 = vsyncpa [#allocation3], 1
    %s365 = scalar_lea.sflag [#allocation3], 1
    %366 = vsyncpa %s365, 1
    %367 = vsyncpa [#allocation6], 1
    %368 = vsyncpa [#allocation4], 1
    %s369 = scalar_lea.sflag [#allocation4], 1
    %370 = vsyncpa %s369, 1

</llo_original>
